<compile_context>
chip_gen: v7x
topology: tpu7x:2x2x1
jax: 0.10.0
libtpu: 0.0.40
codegen_flags: <defaults>
</compile_context>

<pallas_src>
import math

import jax
import jax.numpy as jnp
from jax.experimental import pallas as pl
from jax.experimental.pallas import tpu as pltpu


def mlp_detail_ae_kernel(x_ref, we_ref, be_ref, wd_ref, bd_ref, o_ref):
    """One batch tile of the folded detail autoencoder.

    x_ref  : (TB, D) f32   flattened input tile
    we_ref : (D, C)        encoder weight (compute dtype: bf16 or f32)
    be_ref : (1, C)  f32   encoder bias
    wd_ref : (C, D)        folded decoder weight (compute dtype)
    bd_ref : (1, D)  f32   folded decoder bias
    o_ref  : (TB, D) f32   reconstructed (flattened) output tile
    """
    # encoder: code = x @ We + be   (MXU operands in compute dtype, f32 accumulation)
    x = x_ref[...].astype(we_ref.dtype)
    code = jnp.dot(x, we_ref[...], preferred_element_type=jnp.float32) + be_ref[...]

    # folded decoder: out = code @ W_dec + b_dec  ==  y + fine(cat([y, code]))
    out = (jnp.dot(code.astype(wd_ref.dtype), wd_ref[...],
                   preferred_element_type=jnp.float32)
           + bd_ref[...])

    o_ref[...] = out.astype(o_ref.dtype)


def make_params(key, shape, code_size):
    """PyTorch nn.Linear-style uniform(-1/sqrt(fan_in), +...) init.

    Weights are laid out for `x @ W` (i.e. (in, out), the transpose of torch's
    (out, in) storage).  Returns the RAW (unfolded) module parameters.
    """
    D = math.prod(shape)

    def linear(k, fan_in, fan_out):
        kw, kb = jax.random.split(k)
        bound = 1.0 / math.sqrt(fan_in)
        w = jax.random.uniform(kw, (fan_in, fan_out), jnp.float32, -bound, bound)
        b = jax.random.uniform(kb, (1, fan_out), jnp.float32, -bound, bound)
        return w, b

    k_enc, k_coarse, k_fine = jax.random.split(key, 3)
    we, be = linear(k_enc, D, code_size)          # encoder Linear(D, C)
    wc, bc = linear(k_coarse, code_size, D)       # decoder.coarse Linear(C, D)
    wf, bf = linear(k_fine, D + code_size, D)     # decoder.fine Linear(D+C, D)
    return we, be, wc, bc, wf, bf


def fold_params(params):
    """Collapse the purely-affine decoder into a single (C, D) affine map.

    out = code @ [Wc @ (I + Wfy) + Wfc] + [bc @ (I + Wfy) + bf]
    where Wf = cat([Wfy, Wfc], axis=0) along the cat([y, code]) input order.
    Done once, offline.
    """
    we, be, wc, bc, wf, bf = params
    D = wc.shape[1]
    wfy, wfc = wf[:D, :], wf[D:, :]
    ipw = jnp.eye(D, dtype=jnp.float32) + wfy       # (I + Wfy)
    w_dec = wc @ ipw + wfc                          # (C, D)
    b_dec = bc @ ipw + bf                           # (1, D)
    return we, be, w_dec, b_dec


def _choose_batch_tile(B, batch_tile):
    """Pick a sublane-aligned batch tile.

    Large batches use `batch_tile` rows (memory-bound sweet spot).  Smaller
    batches are split into (at most) two sublane-aligned tiles so v7x's two
    TensorCores both get a grid step whenever there is enough work.
    """
    if B >= 2 * batch_tile:
        return batch_tile
    half = -(-B // 2)                  # cdiv(B, 2)
    return max(8, -(-half // 8) * 8)   # round up to sublane multiple, >= 8


def mlp_detail_autoencoder_forward(x, folded_params, shape, *, batch_tile=512,
                                   compute_dtype=jnp.bfloat16):
    """x: (B, C, H, W) float32 -> (B, C, H, W) float32."""
    we, be, w_dec, b_dec = folded_params
    B = x.shape[0]
    D = math.prod(shape)
    x_flat = x.reshape(B, D)            # identical to torch.nn.Flatten (row-major)

    # --- batch tiling + padding (grid is always cdiv(B, TB) full tiles) ------
    TB = _choose_batch_tile(B, batch_tile)
    num_tiles = -(-B // TB)
    B_pad = num_tiles * TB
    if B_pad != B:
        x_flat = jnp.pad(x_flat, ((0, B_pad - B), (0, 0)))

    # MXU operands in compute dtype (bf16 halves weight DMA + residency);
    # biases stay f32 for the epilogue.
    we_c = we.astype(compute_dtype)
    wd_c = w_dec.astype(compute_dtype)

    def const_spec(a):
        # Constant block index => weight DMA'd once and kept VMEM-resident
        # across batch tiles (post-fold + bf16 this is only ~0.5 MiB total).
        return pl.BlockSpec(a.shape, lambda *_: (0,) * a.ndim)

    out_flat = pl.pallas_call(
        mlp_detail_ae_kernel,
        out_shape=jax.ShapeDtypeStruct((B_pad, D), x.dtype),
        grid=(num_tiles,),
        in_specs=[
            pl.BlockSpec((TB, D), lambda i: (i, 0)),   # x tile, pipelined over batch
            const_spec(we_c), const_spec(be),
            const_spec(wd_c), const_spec(b_dec),
        ],
        out_specs=pl.BlockSpec((TB, D), lambda i: (i, 0)),   # lane-dense output tile
        compiler_params=pltpu.CompilerParams(
            dimension_semantics=("parallel",),          # megacore sharding on v7x
            vmem_limit_bytes=32 * 1024 * 1024,          # headroom for TB=512 tiles, all gens
        ),
    )(x_flat, we_c, be, wd_c, b_dec)

    if B_pad != B:
        out_flat = out_flat[:B]
    return out_flat.reshape(B, *shape)


def reference_forward(x, params, shape):
    """Plain-JAX reference following the PyTorch module structure exactly."""
    B = x.shape[0]
    we, be, wc, bc, wf, bf = params
    xf = x.reshape(B, -1)
    code = xf @ we + be                                  # encoder
    y = code @ wc + bc                                   # decoder.coarse
    y2 = jnp.concatenate([y, code], axis=-1) @ wf + bf   # decoder.fine(cat([y, code]))
    return (y + y2).reshape(B, *shape)


if __name__ == "__main__":
    # MLPDetailAutoEncoder(shape=(4, 16, 16), code_size=128)
    shape = (4, 16, 16)   # flattened dim D = 1024
    code_size = 128       # lane-aligned code width
    B = 2

    key = jax.random.PRNGKey(0)
    key, kx = jax.random.split(key)
    x = jax.random.normal(kx, (B, *shape), jnp.float32)

    params = make_params(key, shape, code_size)
    folded = fold_params(params)
    y_ref = reference_forward(x, params, shape)

    # fp32 compute path: the decoder fold only changes accumulation order.
    y32 = mlp_detail_autoencoder_forward(x, folded, shape, compute_dtype=jnp.float32)
    y32 = jax.block_until_ready(y32)
    assert y32.shape == (B, *shape), y32.shape
    assert jnp.allclose(y32, y_ref, atol=1e-4, rtol=1e-4), "fp32 mismatch vs reference"

    # bf16 MXU operands (default perf path on v5e/v6e/v7x): looser tolerance.
    ybf = mlp_detail_autoencoder_forward(x, folded, shape, compute_dtype=jnp.bfloat16)
    ybf = jax.block_until_ready(ybf)
    assert ybf.shape == (B, *shape), ybf.shape
    assert jnp.allclose(ybf, y_ref, atol=5e-2, rtol=5e-2), "bf16 mismatch vs reference"

    print("KERNEL_OK")
</pallas_src>

<mosaic_0001>
module attributes {stable_mosaic.version = 11 : i64} {
  func.func @mlp_detail_ae_kernel(%arg0: i32, %arg1: memref<8x1024xf32, #tpu.memory_space<vmem>>, %arg2: memref<1024x128xf32, #tpu.memory_space<vmem>>, %arg3: memref<1x128xf32, #tpu.memory_space<vmem>>, %arg4: memref<128x1024xf32, #tpu.memory_space<vmem>>, %arg5: memref<1x1024xf32, #tpu.memory_space<vmem>>, %arg6: memref<8x1024xf32, #tpu.memory_space<vmem>>) attributes {dimension_semantics = [#tpu.dimension_semantics<parallel>], iteration_bounds = array<i64: 1>, scalar_prefetch = 0 : i64, scratch_operands = 0 : i64, tpu.core_type = #tpu.core_type<tc>, window_params = [{transform_indices = @transform_0, window_bounds = array<i64: 8, 1024>}, {pipeline_mode = #tpu.pipeline_mode<synchronous>, transform_indices = @transform_1, window_bounds = array<i64: 1024, 128>}, {pipeline_mode = #tpu.pipeline_mode<synchronous>, transform_indices = @transform_2, window_bounds = array<i64: 1, 128>}, {pipeline_mode = #tpu.pipeline_mode<synchronous>, transform_indices = @transform_3, window_bounds = array<i64: 128, 1024>}, {pipeline_mode = #tpu.pipeline_mode<synchronous>, transform_indices = @transform_4, window_bounds = array<i64: 1, 1024>}, {transform_indices = @transform_5, window_bounds = array<i64: 8, 1024>}]} {
    %c0 = arith.constant 0 : index
    %c0_0 = arith.constant 0 : index
    %0 = vector.load %arg1[%c0, %c0_0] : memref<8x1024xf32, #tpu.memory_space<vmem>>, vector<8x1024xf32>
    %c0_1 = arith.constant 0 : index
    %c0_2 = arith.constant 0 : index
    %1 = vector.load %arg2[%c0_1, %c0_2] : memref<1024x128xf32, #tpu.memory_space<vmem>>, vector<1024x128xf32>
    %cst = arith.constant dense<0.000000e+00> : vector<8x128xf32>
    %2 = tpu.matmul %0, %1, %cst {dimension_numbers = #tpu.dot_dimension_numbers<[1], [0], [0], [1], [0, 0, 1, 1], [], []>} : vector<8x1024xf32>, vector<1024x128xf32>, vector<8x128xf32> -> vector<8x128xf32>
    %c0_3 = arith.constant 0 : index
    %c0_4 = arith.constant 0 : index
    %3 = vector.load %arg3[%c0_3, %c0_4] : memref<1x128xf32, #tpu.memory_space<vmem>>, vector<1x128xf32>
    %4 = vector.broadcast %3 : vector<1x128xf32> to vector<8x128xf32>
    %5 = arith.addf %2, %4 : vector<8x128xf32>
    %c0_5 = arith.constant 0 : index
    %c0_6 = arith.constant 0 : index
    %6 = vector.load %arg4[%c0_5, %c0_6] : memref<128x1024xf32, #tpu.memory_space<vmem>>, vector<128x1024xf32>
    %cst_7 = arith.constant dense<0.000000e+00> : vector<8x1024xf32>
    %7 = tpu.matmul %5, %6, %cst_7 {dimension_numbers = #tpu.dot_dimension_numbers<[1], [0], [0], [1], [0, 0, 1, 1], [], []>} : vector<8x128xf32>, vector<128x1024xf32>, vector<8x1024xf32> -> vector<8x1024xf32>
    %c0_8 = arith.constant 0 : index
    %c0_9 = arith.constant 0 : index
    %8 = vector.load %arg5[%c0_8, %c0_9] : memref<1x1024xf32, #tpu.memory_space<vmem>>, vector<1x1024xf32>
    %9 = vector.broadcast %8 : vector<1x1024xf32> to vector<8x1024xf32>
    %10 = arith.addf %7, %9 : vector<8x1024xf32>
    %c0_10 = arith.constant 0 : index
    %c0_11 = arith.constant 0 : index
    %11 = vector.load %arg6[%c0_10, %c0_11] : memref<8x1024xf32, #tpu.memory_space<vmem>>, vector<8x1024xf32>
    tpu.vector_store %arg6[%c0_10, %c0_11], %10 {strides = array<i32>} : memref<8x1024xf32, #tpu.memory_space<vmem>>, vector<8x1024xf32>,
    return
  }
  func.func @transform_0(%arg0: i32) -> (i32, i32) {
    %c0_i32 = arith.constant 0 : i32
    %c0_i32_0 = arith.constant 0 : i32
    return %arg0, %c0_i32 : i32, i32
  }
  func.func @transform_1(%arg0: i32) -> (i32, i32) {
    %c0_i32 = arith.constant 0 : i32
    %c0_i32_0 = arith.constant 0 : i32
    %c0_i32_1 = arith.constant 0 : i32
    return %c0_i32, %c0_i32_0 : i32, i32
  }
  func.func @transform_2(%arg0: i32) -> (i32, i32) {
    %c0_i32 = arith.constant 0 : i32
    %c0_i32_0 = arith.constant 0 : i32
    %c0_i32_1 = arith.constant 0 : i32
    return %c0_i32, %c0_i32_0 : i32, i32
  }
  func.func @transform_3(%arg0: i32) -> (i32, i32) {
    %c0_i32 = arith.constant 0 : i32
    %c0_i32_0 = arith.constant 0 : i32
    %c0_i32_1 = arith.constant 0 : i32
    return %c0_i32, %c0_i32_0 : i32, i32
  }
  func.func @transform_4(%arg0: i32) -> (i32, i32) {
    %c0_i32 = arith.constant 0 : i32
    %c0_i32_0 = arith.constant 0 : i32
    %c0_i32_1 = arith.constant 0 : i32
    return %c0_i32, %c0_i32_0 : i32, i32
  }
  func.func @transform_5(%arg0: i32) -> (i32, i32) {
    %c0_i32 = arith.constant 0 : i32
    %c0_i32_0 = arith.constant 0 : i32
    return %arg0, %c0_i32 : i32, i32
  }
}

</mosaic_0001>

<llo_original>
// kernel: tpu_custom_call.1
$region0: #{tpu_custom_call.1}
  #allocation0 [shape = 'u32[]', space=smem, size = 0x4, offset = 0x4, fixed_abs, tag = 'smem constant byte address 0x4 - core index']
  #allocation1 [shape = 'u32[144,128]{1,0:T(1,128)}', space=vmem, size = 0x12000, scoped, tag = 'internal scratch']
  %s0 = inlined_call_operand.hbm [shape: f32[8,1024], index: 0, kind: input, shape index: {}]
  %s1 = inlined_call_operand.hbm [shape: f32[1024,128], index: 1, kind: input, shape index: {}]
  %s2 = inlined_call_operand.vmem [shape: f32[1,128], index: 2, kind: input, shape index: {}]
  %s3 = inlined_call_operand.hbm [shape: f32[128,1024], index: 3, kind: input, shape index: {}]
  %s4 = inlined_call_operand.vmem [shape: f32[1,1024], index: 4, kind: input, shape index: {}]
  %s5 = inlined_call_operand.hbm [shape: f32[8,1024], index: 5, kind: output, shape index: {}]
  %s6 = sld [smem:[#allocation0]]
  $region42: #{tpu_custom_call.1} parent=0
    _
  %s8 = ssub.s32 1, %s6
  %s9 = scalar_select 0, %s8, %s6
  $region1: #{tpu_custom_call.1} parent=0
    #allocation2 [shape = 'u8[32768]{0}', space=vmem, size = 0x8000, scoped, tag = 'input window, operand 0, single buffered']
    #allocation3 [shape = 's32[1]{0}', space=sflag, size = 0x4, scoped, tag = 'scoped memory for tpu_custom_call.1']
    #allocation4 [shape = 's32[1]{0}', space=sflag, size = 0x4, scoped, tag = 'scoped memory for tpu_custom_call.1']
    #allocation5 [shape = 'u8[524288]{0}', space=vmem, size = 0x80000, scoped, tag = 'input window, operand 1, single buffered']
    #allocation6 [shape = 's32[1]{0}', space=sflag, size = 0x4, scoped, tag = 'scoped memory for tpu_custom_call.1']
    #allocation7 [shape = 'u8[524288]{0}', space=vmem, size = 0x80000, scoped, tag = 'input window, operand 3, single buffered']
    #allocation8 [shape = 'u8[32768]{0}', space=vmem, size = 0x8000, scoped, tag = 'output window, operand 0, single buffered']
    %10 = vsyncpa [#allocation3], 0
    %11 = vsyncpa [#allocation6], 0
    %12 = vsyncpa [#allocation4], 0
    // Predicated region
    $region2: #{tpu_custom_call.1} parent=1 // pred_check
      _
    $region3: #{tpu_custom_call.1} parent=1 // pred_check_branch
      %14 = sbr.rel (0) target = $region5
    $region4: #{tpu_custom_call.1} parent=1 // pred_region
      %s16 = ssub.s32 1024, 1024
      %17 = vsyncadd [#allocation3], %s16
      %s19 = sshll.u32 [#allocation2], 4
      %s20 = int_to_ptr.vmem [resolvable:$true] %s19
      %22 = dma.hbm_to_vmem [thread:$0]  %s0, 1024, %s20, [#allocation3]
    $region5: #{tpu_custom_call.1} parent=1 // pred_fallthru
      _
    // Predicated region
    $region6: #{tpu_custom_call.1} parent=1 // pred_check
      _
    $region7: #{tpu_custom_call.1} parent=1 // pred_check_branch
      %24 = sbr.rel (0) target = $region9
    $region8: #{tpu_custom_call.1} parent=1 // pred_region
      %s26 = ssub.s32 16384, 16384
      %27 = vsyncadd [#allocation6], %s26
      %s28 = sshll.u32 [#allocation5], 4
      %s29 = int_to_ptr.vmem [resolvable:$true] %s28
      %34 = dma.hbm_to_vmem [thread:$0]  %s1, 16384, %s29, [#allocation6], 128, 128, 8
    $region9: #{tpu_custom_call.1} parent=1 // pred_fallthru
      _
    // Predicated region
    $region10: #{tpu_custom_call.1} parent=1 // pred_check
      _
    $region11: #{tpu_custom_call.1} parent=1 // pred_check_branch
      %36 = sbr.rel (0) target = $region13
    $region12: #{tpu_custom_call.1} parent=1 // pred_region
      _
    $region13: #{tpu_custom_call.1} parent=1 // pred_fallthru
      _
    // Predicated region
    $region14: #{tpu_custom_call.1} parent=1 // pred_check
      _
    $region15: #{tpu_custom_call.1} parent=1 // pred_check_branch
      %38 = sbr.rel (0) target = $region17
    $region16: #{tpu_custom_call.1} parent=1 // pred_region
      %s40 = ssub.s32 16384, 16384
      %41 = vsyncadd [#allocation6], %s40
      %s42 = sshll.u32 [#allocation7], 4
      %s43 = int_to_ptr.vmem [resolvable:$true] %s42
      %48 = dma.hbm_to_vmem [thread:$0]  %s3, 16384, %s43, [#allocation6], 1024, 1024, 64
    $region17: #{tpu_custom_call.1} parent=1 // pred_fallthru
      _
    // Predicated region
    $region18: #{tpu_custom_call.1} parent=1 // pred_check
      _
    $region19: #{tpu_custom_call.1} parent=1 // pred_check_branch
      %50 = sbr.rel (0) target = $region21
    $region20: #{tpu_custom_call.1} parent=1 // pred_region
      _
    $region21: #{tpu_custom_call.1} parent=1 // pred_fallthru
      _
    // Predicated region
    $region22: #{tpu_custom_call.1} parent=1 // pred_check
      _
    $region23: #{tpu_custom_call.1} parent=1 // pred_check_branch
      %52 = sbr.rel (0) target = $region25
    $region24: #{tpu_custom_call.1} parent=1 // pred_region
      %53 = dma.done [#allocation3], 1024
    $region25: #{tpu_custom_call.1} parent=1 // pred_fallthru
      _
    // Predicated region
    $region26: #{tpu_custom_call.1} parent=1 // pred_check
      _
    $region27: #{tpu_custom_call.1} parent=1 // pred_check_branch
      %55 = sbr.rel (0) target = $region29
    $region28: #{tpu_custom_call.1} parent=1 // pred_region
      %56 = dma.done [#allocation6], 16384
    $region29: #{tpu_custom_call.1} parent=1 // pred_fallthru
      _
    // Predicated region
    $region30: #{tpu_custom_call.1} parent=1 // pred_check
      _
    $region31: #{tpu_custom_call.1} parent=1 // pred_check_branch
      %58 = sbr.rel (0) target = $region33
    $region32: #{tpu_custom_call.1} parent=1 // pred_region
      %59 = dma.done [#allocation6], 16384
    $region33: #{tpu_custom_call.1} parent=1 // pred_fallthru
      _
    %v60 = vld [vmem:[#allocation2] sm:$0xff]
    %v61 = vld [vmem:[#allocation2 + $0x8] sm:$0xff]
    %v62 = vld [vmem:[#allocation2 + $0x10] sm:$0xff]
    %v63 = vld [vmem:[#allocation2 + $0x18] sm:$0xff]
    %v64 = vld [vmem:[#allocation2 + $0x20] sm:$0xff]
    %v65 = vld [vmem:[#allocation2 + $0x28] sm:$0xff]
    %v66 = vld [vmem:[#allocation2 + $0x30] sm:$0xff]
    %v67 = vld [vmem:[#allocation2 + $0x38] sm:$0xff]
    %v68 = vld [vmem:[#allocation5] sm:$0xff]
    %v69 = vld [vmem:[#allocation5 + $0x8] sm:$0xff]
    %v70 = vld [vmem:[#allocation5 + $0x10] sm:$0xff]
    %v71 = vld [vmem:[#allocation5 + $0x18] sm:$0xff]
    %v72 = vld [vmem:[#allocation5 + $0x20] sm:$0xff]
    %v73 = vld [vmem:[#allocation5 + $0x28] sm:$0xff]
    %v74 = vld [vmem:[#allocation5 + $0x30] sm:$0xff]
    %v75 = vld [vmem:[#allocation5 + $0x38] sm:$0xff]
    %v76 = vld [vmem:[#allocation5 + $0x40] sm:$0xff]
    %v77 = vld [vmem:[#allocation5 + $0x48] sm:$0xff]
    %v78 = vld [vmem:[#allocation5 + $0x50] sm:$0xff]
    %v79 = vld [vmem:[#allocation5 + $0x58] sm:$0xff]
    %v80 = vld [vmem:[#allocation5 + $0x60] sm:$0xff]
    %v81 = vld [vmem:[#allocation5 + $0x68] sm:$0xff]
    %v82 = vld [vmem:[#allocation5 + $0x70] sm:$0xff]
    %v83 = vld [vmem:[#allocation5 + $0x78] sm:$0xff]
    %v84 = vld [vmem:[#allocation5 + $0x80] sm:$0xff]
    %v85 = vld [vmem:[#allocation5 + $0x88] sm:$0xff]
    %v86 = vld [vmem:[#allocation5 + $0x90] sm:$0xff]
    %v87 = vld [vmem:[#allocation5 + $0x98] sm:$0xff]
    %v88 = vld [vmem:[#allocation5 + $0xa0] sm:$0xff]
    %v89 = vld [vmem:[#allocation5 + $0xa8] sm:$0xff]
    %v90 = vld [vmem:[#allocation5 + $0xb0] sm:$0xff]
    %v91 = vld [vmem:[#allocation5 + $0xb8] sm:$0xff]
    %v92 = vld [vmem:[#allocation5 + $0xc0] sm:$0xff]
    %v93 = vld [vmem:[#allocation5 + $0xc8] sm:$0xff]
    %v94 = vld [vmem:[#allocation5 + $0xd0] sm:$0xff]
    %v95 = vld [vmem:[#allocation5 + $0xd8] sm:$0xff]
    %v96 = vld [vmem:[#allocation5 + $0xe0] sm:$0xff]
    %v97 = vld [vmem:[#allocation5 + $0xe8] sm:$0xff]
    %v98 = vld [vmem:[#allocation5 + $0xf0] sm:$0xff]
    %v99 = vld [vmem:[#allocation5 + $0xf8] sm:$0xff]
    %v100 = vld [vmem:[#allocation5 + $0x100] sm:$0xff]
    %v101 = vld [vmem:[#allocation5 + $0x108] sm:$0xff]
    %v102 = vld [vmem:[#allocation5 + $0x110] sm:$0xff]
    %v103 = vld [vmem:[#allocation5 + $0x118] sm:$0xff]
    %v104 = vld [vmem:[#allocation5 + $0x120] sm:$0xff]
    %v105 = vld [vmem:[#allocation5 + $0x128] sm:$0xff]
    %v106 = vld [vmem:[#allocation5 + $0x130] sm:$0xff]
    %v107 = vld [vmem:[#allocation5 + $0x138] sm:$0xff]
    %v108 = vld [vmem:[#allocation5 + $0x140] sm:$0xff]
    %v109 = vld [vmem:[#allocation5 + $0x148] sm:$0xff]
    %v110 = vld [vmem:[#allocation5 + $0x150] sm:$0xff]
    %v111 = vld [vmem:[#allocation5 + $0x158] sm:$0xff]
    %v112 = vld [vmem:[#allocation5 + $0x160] sm:$0xff]
    %v113 = vld [vmem:[#allocation5 + $0x168] sm:$0xff]
    %v114 = vld [vmem:[#allocation5 + $0x170] sm:$0xff]
    %v115 = vld [vmem:[#allocation5 + $0x178] sm:$0xff]
    %v116 = vld [vmem:[#allocation5 + $0x180] sm:$0xff]
    %v117 = vld [vmem:[#allocation5 + $0x188] sm:$0xff]
    %v118 = vld [vmem:[#allocation5 + $0x190] sm:$0xff]
    %v119 = vld [vmem:[#allocation5 + $0x198] sm:$0xff]
    %v120 = vld [vmem:[#allocation5 + $0x1a0] sm:$0xff]
    %v121 = vld [vmem:[#allocation5 + $0x1a8] sm:$0xff]
    %v122 = vld [vmem:[#allocation5 + $0x1b0] sm:$0xff]
    %v123 = vld [vmem:[#allocation5 + $0x1b8] sm:$0xff]
    %v124 = vld [vmem:[#allocation5 + $0x1c0] sm:$0xff]
    %v125 = vld [vmem:[#allocation5 + $0x1c8] sm:$0xff]
    %v126 = vld [vmem:[#allocation5 + $0x1d0] sm:$0xff]
    %v127 = vld [vmem:[#allocation5 + $0x1d8] sm:$0xff]
    %v128 = vld [vmem:[#allocation5 + $0x1e0] sm:$0xff]
    %v129 = vld [vmem:[#allocation5 + $0x1e8] sm:$0xff]
    %v130 = vld [vmem:[#allocation5 + $0x1f0] sm:$0xff]
    %v131 = vld [vmem:[#allocation5 + $0x1f8] sm:$0xff]
    %v132 = vld [vmem:[#allocation5 + $0x200] sm:$0xff]
    %v133 = vld [vmem:[#allocation5 + $0x208] sm:$0xff]
    %v134 = vld [vmem:[#allocation5 + $0x210] sm:$0xff]
    %v135 = vld [vmem:[#allocation5 + $0x218] sm:$0xff]
    %v136 = vld [vmem:[#allocation5 + $0x220] sm:$0xff]
    %v137 = vld [vmem:[#allocation5 + $0x228] sm:$0xff]
    %v138 = vld [vmem:[#allocation5 + $0x230] sm:$0xff]
    %v139 = vld [vmem:[#allocation5 + $0x238] sm:$0xff]
    %v140 = vld [vmem:[#allocation5 + $0x240] sm:$0xff]
    %v141 = vld [vmem:[#allocation5 + $0x248] sm:$0xff]
    %v142 = vld [vmem:[#allocation5 + $0x250] sm:$0xff]
    %v143 = vld [vmem:[#allocation5 + $0x258] sm:$0xff]
    %v144 = vld [vmem:[#allocation5 + $0x260] sm:$0xff]
    %v145 = vld [vmem:[#allocation5 + $0x268] sm:$0xff]
    %v146 = vld [vmem:[#allocation5 + $0x270] sm:$0xff]
    %v147 = vld [vmem:[#allocation5 + $0x278] sm:$0xff]
    %v148 = vld [vmem:[#allocation5 + $0x280] sm:$0xff]
    %v149 = vld [vmem:[#allocation5 + $0x288] sm:$0xff]
    %v150 = vld [vmem:[#allocation5 + $0x290] sm:$0xff]
    %v151 = vld [vmem:[#allocation5 + $0x298] sm:$0xff]
    %v152 = vld [vmem:[#allocation5 + $0x2a0] sm:$0xff]
    %v153 = vld [vmem:[#allocation5 + $0x2a8] sm:$0xff]
    %v154 = vld [vmem:[#allocation5 + $0x2b0] sm:$0xff]
    %v155 = vld [vmem:[#allocation5 + $0x2b8] sm:$0xff]
    %v156 = vld [vmem:[#allocation5 + $0x2c0] sm:$0xff]
    %v157 = vld [vmem:[#allocation5 + $0x2c8] sm:$0xff]
    %v158 = vld [vmem:[#allocation5 + $0x2d0] sm:$0xff]
    %v159 = vld [vmem:[#allocation5 + $0x2d8] sm:$0xff]
    %v160 = vld [vmem:[#allocation5 + $0x2e0] sm:$0xff]
    %v161 = vld [vmem:[#allocation5 + $0x2e8] sm:$0xff]
    %v162 = vld [vmem:[#allocation5 + $0x2f0] sm:$0xff]
    %v163 = vld [vmem:[#allocation5 + $0x2f8] sm:$0xff]
    %v164 = vld [vmem:[#allocation5 + $0x300] sm:$0xff]
    %v165 = vld [vmem:[#allocation5 + $0x308] sm:$0xff]
    %v166 = vld [vmem:[#allocation5 + $0x310] sm:$0xff]
    %v167 = vld [vmem:[#allocation5 + $0x318] sm:$0xff]
    %v168 = vld [vmem:[#allocation5 + $0x320] sm:$0xff]
    %v169 = vld [vmem:[#allocation5 + $0x328] sm:$0xff]
    %v170 = vld [vmem:[#allocation5 + $0x330] sm:$0xff]
    %v171 = vld [vmem:[#allocation5 + $0x338] sm:$0xff]
    %v172 = vld [vmem:[#allocation5 + $0x340] sm:$0xff]
    %v173 = vld [vmem:[#allocation5 + $0x348] sm:$0xff]
    %v174 = vld [vmem:[#allocation5 + $0x350] sm:$0xff]
    %v175 = vld [vmem:[#allocation5 + $0x358] sm:$0xff]
    %v176 = vld [vmem:[#allocation5 + $0x360] sm:$0xff]
    %v177 = vld [vmem:[#allocation5 + $0x368] sm:$0xff]
    %v178 = vld [vmem:[#allocation5 + $0x370] sm:$0xff]
    %v179 = vld [vmem:[#allocation5 + $0x378] sm:$0xff]
    %v180 = vld [vmem:[#allocation5 + $0x380] sm:$0xff]
    %v181 = vld [vmem:[#allocation5 + $0x388] sm:$0xff]
    %v182 = vld [vmem:[#allocation5 + $0x390] sm:$0xff]
    %v183 = vld [vmem:[#allocation5 + $0x398] sm:$0xff]
    %v184 = vld [vmem:[#allocation5 + $0x3a0] sm:$0xff]
    %v185 = vld [vmem:[#allocation5 + $0x3a8] sm:$0xff]
    %v186 = vld [vmem:[#allocation5 + $0x3b0] sm:$0xff]
    %v187 = vld [vmem:[#allocation5 + $0x3b8] sm:$0xff]
    %v188 = vld [vmem:[#allocation5 + $0x3c0] sm:$0xff]
    %v189 = vld [vmem:[#allocation5 + $0x3c8] sm:$0xff]
    %v190 = vld [vmem:[#allocation5 + $0x3d0] sm:$0xff]
    %v191 = vld [vmem:[#allocation5 + $0x3d8] sm:$0xff]
    %v192 = vld [vmem:[#allocation5 + $0x3e0] sm:$0xff]
    %v193 = vld [vmem:[#allocation5 + $0x3e8] sm:$0xff]
    %v194 = vld [vmem:[#allocation5 + $0x3f0] sm:$0xff]
    %v195 = vld [vmem:[#allocation5 + $0x3f8] sm:$0xff]
    %v196 = vld [vmem:[%s2] sm:$0x1]
    %v198 = vlaneseq
    %v199 = vshrl.u32 %v198, 7
    %v200 = vsub.s32 0, %v199
    %v201 = vrot.slane %v196, %v200
    %203 = vmatprep.subr.mxu0 0.0
    %204 = vmatpush1.msra.mxu0 %v68
    %205 = vmatprep.subr.mxu0 0.0
    %206 = vmatpush1.msra.mxu0 %v69
    %207 = vmatprep.subr.mxu0 0.0
    %208 = vmatpush1.msra.mxu0 %v70
    %209 = vmatprep.subr.mxu0 0.0
    %210 = vmatpush1.msra.mxu0 %v71
    %211 = vmatprep.subr.mxu0 0.0
    %212 = vmatpush1.msra.mxu0 %v72
    %213 = vmatprep.subr.mxu0 0.0
    %214 = vmatpush1.msra.mxu0 %v73
    %215 = vmatprep.subr.mxu0 0.0
    %216 = vmatpush1.msra.mxu0 %v74
    %217 = vmatprep.subr.mxu0 0.0
    %218 = vmatpush1.msra.mxu0 %v75
    %219 = vmatprep.subr.mxu0 0.0
    %220 = vmatpush1.msra.mxu0 %v76
    %221 = vmatprep.subr.mxu0 0.0
    %222 = vmatpush1.msra.mxu0 %v77
    %223 = vmatprep.subr.mxu0 0.0
    %224 = vmatpush1.msra.mxu0 %v78
    %225 = vmatprep.subr.mxu0 0.0
    %226 = vmatpush1.msra.mxu0 %v79
    %227 = vmatprep.subr.mxu0 0.0
    %228 = vmatpush1.msra.mxu0 %v80
    %229 = vmatprep.subr.mxu0 0.0
    %230 = vmatpush1.msra.mxu0 %v81
    %231 = vmatprep.subr.mxu0 0.0
    %232 = vmatpush1.msra.mxu0 %v82
    %233 = vmatprep.subr.mxu0 0.0
    %234 = vmatpush1.msra.mxu0 %v83
    %235 = vmatprep.subr.mxu0 0.0
    %236 = vmatpush1.msra.mxu0 %v84
    %237 = vmatprep.subr.mxu0 0.0
    %238 = vmatpush1.msra.mxu0 %v85
    %239 = vmatprep.subr.mxu0 0.0
    %240 = vmatpush1.msra.mxu0 %v86
    %241 = vmatprep.subr.mxu0 0.0
    %242 = vmatpush1.msra.mxu0 %v87
    %243 = vmatprep.subr.mxu0 0.0
    %244 = vmatpush1.msra.mxu0 %v88
    %245 = vmatprep.subr.mxu0 0.0
    %246 = vmatpush1.msra.mxu0 %v89
    %247 = vmatprep.subr.mxu0 0.0
    %248 = vmatpush1.msra.mxu0 %v90
    %249 = vmatprep.subr.mxu0 0.0
    %250 = vmatpush1.msra.mxu0 %v91
    %251 = vmatprep.subr.mxu0 0.0
    %252 = vmatpush1.msra.mxu0 %v92
    %253 = vmatprep.subr.mxu0 0.0
    %254 = vmatpush1.msra.mxu0 %v93
    %255 = vmatprep.subr.mxu0 0.0
    %256 = vmatpush1.msra.mxu0 %v94
    %257 = vmatprep.subr.mxu0 0.0
    %258 = vmatpush1.msra.mxu0 %v95
    %259 = vmatprep.subr.mxu0 0.0
    %260 = vmatpush1.msra.mxu0 %v96
    %261 = vmatprep.subr.mxu0 0.0
    %262 = vmatpush1.msra.mxu0 %v97
    %263 = vmatprep.subr.mxu0 0.0
    %264 = vmatpush1.msra.mxu0 %v98
    %265 = vmatprep.subr.mxu0 0.0
    %266 = vmatpush1.msra.mxu0 %v99
    %267 = vmatprep.mubr.f32.mxu0 %v61
    %268 = vmatmul.mubr.f32.gmra.mrb[0].mxu0 %v60
    %v269 = vpop.f32.mrb[0].mxu0
    %v270 = vadd.f32 %v201, %v269
    %v271 = vpop.f32.mrb[0].mxu0
    %272 = vdwg.mxu0
    %273 = vmatprep.subr.mxu0 0.0
    %274 = vmatpush1.msra.mxu0 %v100
    %275 = vmatprep.subr.mxu0 0.0
    %276 = vmatpush1.msra.mxu0 %v101
    %277 = vmatprep.subr.mxu0 0.0
    %278 = vmatpush1.msra.mxu0 %v102
    %279 = vmatprep.subr.mxu0 0.0
    %280 = vmatpush1.msra.mxu0 %v103
    %281 = vmatprep.subr.mxu0 0.0
    %282 = vmatpush1.msra.mxu0 %v104
    %283 = vmatprep.subr.mxu0 0.0
    %284 = vmatpush1.msra.mxu0 %v105
    %285 = vmatprep.subr.mxu0 0.0
    %286 = vmatpush1.msra.mxu0 %v106
    %287 = vmatprep.subr.mxu0 0.0
    %288 = vmatpush1.msra.mxu0 %v107
    %289 = vmatprep.subr.mxu0 0.0
    %290 = vmatpush1.msra.mxu0 %v108
    %291 = vmatprep.subr.mxu0 0.0
    %292 = vmatpush1.msra.mxu0 %v109
    %293 = vmatprep.subr.mxu0 0.0
    %294 = vmatpush1.msra.mxu0 %v110
    %295 = vmatprep.subr.mxu0 0.0
    %296 = vmatpush1.msra.mxu0 %v111
    %297 = vmatprep.subr.mxu0 0.0
    %298 = vmatpush1.msra.mxu0 %v112
    %299 = vmatprep.subr.mxu0 0.0
    %300 = vmatpush1.msra.mxu0 %v113
    %301 = vmatprep.subr.mxu0 0.0
    %302 = vmatpush1.msra.mxu0 %v114
    %303 = vmatprep.subr.mxu0 0.0
    %304 = vmatpush1.msra.mxu0 %v115
    %305 = vmatprep.subr.mxu0 0.0
    %306 = vmatpush1.msra.mxu0 %v116
    %307 = vmatprep.subr.mxu0 0.0
    %308 = vmatpush1.msra.mxu0 %v117
    %309 = vmatprep.subr.mxu0 0.0
    %310 = vmatpush1.msra.mxu0 %v118
    %311 = vmatprep.subr.mxu0 0.0
    %312 = vmatpush1.msra.mxu0 %v119
    %313 = vmatprep.subr.mxu0 0.0
    %314 = vmatpush1.msra.mxu0 %v120
    %315 = vmatprep.subr.mxu0 0.0
    %316 = vmatpush1.msra.mxu0 %v121
    %317 = vmatprep.subr.mxu0 0.0
    %318 = vmatpush1.msra.mxu0 %v122
    %319 = vmatprep.subr.mxu0 0.0
    %320 = vmatpush1.msra.mxu0 %v123
    %321 = vmatprep.subr.mxu0 0.0
    %322 = vmatpush1.msra.mxu0 %v124
    %323 = vmatprep.subr.mxu0 0.0
    %324 = vmatpush1.msra.mxu0 %v125
    %325 = vmatprep.subr.mxu0 0.0
    %326 = vmatpush1.msra.mxu0 %v126
    %327 = vmatprep.subr.mxu0 0.0
    %328 = vmatpush1.msra.mxu0 %v127
    %329 = vmatprep.subr.mxu0 0.0
    %330 = vmatpush1.msra.mxu0 %v128
    %331 = vmatprep.subr.mxu0 0.0
    %332 = vmatpush1.msra.mxu0 %v129
    %333 = vmatprep.subr.mxu0 0.0
    %334 = vmatpush1.msra.mxu0 %v130
    %335 = vmatprep.subr.mxu0 0.0
    %336 = vmatpush1.msra.mxu0 %v131
    %337 = vmatprep.mubr.f32.mxu0 %v63
    %338 = vmatmul.mubr.f32.gmra.mrb[0].mxu0 %v62
    %v339 = vpop.f32.mrb[0].mxu0
    %v340 = vadd.f32 %v270, %v339
    %v341 = vpop.f32.mrb[0].mxu0
    %342 = vdwg.mxu0
    %343 = vmatprep.subr.mxu0 0.0
    %344 = vmatpush1.msra.mxu0 %v132
    %345 = vmatprep.subr.mxu0 0.0
    %346 = vmatpush1.msra.mxu0 %v133
    %347 = vmatprep.subr.mxu0 0.0
    %348 = vmatpush1.msra.mxu0 %v134
    %349 = vmatprep.subr.mxu0 0.0
    %350 = vmatpush1.msra.mxu0 %v135
    %351 = vmatprep.subr.mxu0 0.0
    %352 = vmatpush1.msra.mxu0 %v136
    %353 = vmatprep.subr.mxu0 0.0
    %354 = vmatpush1.msra.mxu0 %v137
    %355 = vmatprep.subr.mxu0 0.0
    %356 = vmatpush1.msra.mxu0 %v138
    %357 = vmatprep.subr.mxu0 0.0
    %358 = vmatpush1.msra.mxu0 %v139
    %359 = vmatprep.subr.mxu0 0.0
    %360 = vmatpush1.msra.mxu0 %v140
    %361 = vmatprep.subr.mxu0 0.0
    %362 = vmatpush1.msra.mxu0 %v141
    %363 = vmatprep.subr.mxu0 0.0
    %364 = vmatpush1.msra.mxu0 %v142
    %365 = vmatprep.subr.mxu0 0.0
    %366 = vmatpush1.msra.mxu0 %v143
    %367 = vmatprep.subr.mxu0 0.0
    %368 = vmatpush1.msra.mxu0 %v144
    %369 = vmatprep.subr.mxu0 0.0
    %370 = vmatpush1.msra.mxu0 %v145
    %371 = vmatprep.subr.mxu0 0.0
    %372 = vmatpush1.msra.mxu0 %v146
    %373 = vmatprep.subr.mxu0 0.0
    %374 = vmatpush1.msra.mxu0 %v147
    %375 = vmatprep.subr.mxu0 0.0
    %376 = vmatpush1.msra.mxu0 %v148
    %377 = vmatprep.subr.mxu0 0.0
    %378 = vmatpush1.msra.mxu0 %v149
    %379 = vmatprep.subr.mxu0 0.0
    %380 = vmatpush1.msra.mxu0 %v150
    %381 = vmatprep.subr.mxu0 0.0
    %382 = vmatpush1.msra.mxu0 %v151
    %383 = vmatprep.subr.mxu0 0.0
    %384 = vmatpush1.msra.mxu0 %v152
    %385 = vmatprep.subr.mxu0 0.0
    %386 = vmatpush1.msra.mxu0 %v153
    %387 = vmatprep.subr.mxu0 0.0
    %388 = vmatpush1.msra.mxu0 %v154
    %389 = vmatprep.subr.mxu0 0.0
    %390 = vmatpush1.msra.mxu0 %v155
    %391 = vmatprep.subr.mxu0 0.0
    %392 = vmatpush1.msra.mxu0 %v156
    %393 = vmatprep.subr.mxu0 0.0
    %394 = vmatpush1.msra.mxu0 %v157
    %395 = vmatprep.subr.mxu0 0.0
    %396 = vmatpush1.msra.mxu0 %v158
    %397 = vmatprep.subr.mxu0 0.0
    %398 = vmatpush1.msra.mxu0 %v159
    %399 = vmatprep.subr.mxu0 0.0
    %400 = vmatpush1.msra.mxu0 %v160
    %401 = vmatprep.subr.mxu0 0.0
    %402 = vmatpush1.msra.mxu0 %v161
    %403 = vmatprep.subr.mxu0 0.0
    %404 = vmatpush1.msra.mxu0 %v162
    %405 = vmatprep.subr.mxu0 0.0
    %406 = vmatpush1.msra.mxu0 %v163
    %407 = vmatprep.mubr.f32.mxu0 %v65
    %408 = vmatmul.mubr.f32.gmra.mrb[0].mxu0 %v64
    %v409 = vpop.f32.mrb[0].mxu0
    %v410 = vadd.f32 %v340, %v409
    %v411 = vpop.f32.mrb[0].mxu0
    %412 = vdwg.mxu0
    %413 = vmatprep.subr.mxu0 0.0
    %414 = vmatpush1.msra.mxu0 %v164
    %415 = vmatprep.subr.mxu0 0.0
    %416 = vmatpush1.msra.mxu0 %v165
    %417 = vmatprep.subr.mxu0 0.0
    %418 = vmatpush1.msra.mxu0 %v166
    %419 = vmatprep.subr.mxu0 0.0
    %420 = vmatpush1.msra.mxu0 %v167
    %421 = vmatprep.subr.mxu0 0.0
    %422 = vmatpush1.msra.mxu0 %v168
    %423 = vmatprep.subr.mxu0 0.0
    %424 = vmatpush1.msra.mxu0 %v169
    %425 = vmatprep.subr.mxu0 0.0
    %426 = vmatpush1.msra.mxu0 %v170
    %427 = vmatprep.subr.mxu0 0.0
    %428 = vmatpush1.msra.mxu0 %v171
    %429 = vmatprep.subr.mxu0 0.0
    %430 = vmatpush1.msra.mxu0 %v172
    %431 = vmatprep.subr.mxu0 0.0
    %432 = vmatpush1.msra.mxu0 %v173
    %433 = vmatprep.subr.mxu0 0.0
    %434 = vmatpush1.msra.mxu0 %v174
    %435 = vmatprep.subr.mxu0 0.0
    %436 = vmatpush1.msra.mxu0 %v175
    %437 = vmatprep.subr.mxu0 0.0
    %438 = vmatpush1.msra.mxu0 %v176
    %439 = vmatprep.subr.mxu0 0.0
    %440 = vmatpush1.msra.mxu0 %v177
    %441 = vmatprep.subr.mxu0 0.0
    %442 = vmatpush1.msra.mxu0 %v178
    %443 = vmatprep.subr.mxu0 0.0
    %444 = vmatpush1.msra.mxu0 %v179
    %445 = vmatprep.subr.mxu0 0.0
    %446 = vmatpush1.msra.mxu0 %v180
    %447 = vmatprep.subr.mxu0 0.0
    %448 = vmatpush1.msra.mxu0 %v181
    %449 = vmatprep.subr.mxu0 0.0
    %450 = vmatpush1.msra.mxu0 %v182
    %451 = vmatprep.subr.mxu0 0.0
    %452 = vmatpush1.msra.mxu0 %v183
    %453 = vmatprep.subr.mxu0 0.0
    %454 = vmatpush1.msra.mxu0 %v184
    %455 = vmatprep.subr.mxu0 0.0
    %456 = vmatpush1.msra.mxu0 %v185
    %457 = vmatprep.subr.mxu0 0.0
    %458 = vmatpush1.msra.mxu0 %v186
    %459 = vmatprep.subr.mxu0 0.0
    %460 = vmatpush1.msra.mxu0 %v187
    %461 = vmatprep.subr.mxu0 0.0
    %462 = vmatpush1.msra.mxu0 %v188
    %463 = vmatprep.subr.mxu0 0.0
    %464 = vmatpush1.msra.mxu0 %v189
    %465 = vmatprep.subr.mxu0 0.0
    %466 = vmatpush1.msra.mxu0 %v190
    %467 = vmatprep.subr.mxu0 0.0
    %468 = vmatpush1.msra.mxu0 %v191
    %469 = vmatprep.subr.mxu0 0.0
    %470 = vmatpush1.msra.mxu0 %v192
    %471 = vmatprep.subr.mxu0 0.0
    %472 = vmatpush1.msra.mxu0 %v193
    %473 = vmatprep.subr.mxu0 0.0
    %474 = vmatpush1.msra.mxu0 %v194
    %475 = vmatprep.subr.mxu0 0.0
    %476 = vmatpush1.msra.mxu0 %v195
    %477 = vmatprep.mubr.f32.mxu0 %v67
    %478 = vmatmul.mubr.f32.gmra.mrb[0].mxu0 %v66
    %v479 = vpop.f32.mrb[0].mxu0
    %v480 = vadd.f32 %v410, %v479
    %v481 = vpop.f32.mrb[0].mxu0
    %482 = vdwg.mxu0
    %v483 = vld [vmem:[#allocation7] sm:$0xff]
    %v484 = vld [vmem:[#allocation7 + $0x8] sm:$0xff]
    %v485 = vld [vmem:[#allocation7 + $0x10] sm:$0xff]
    %v486 = vld [vmem:[#allocation7 + $0x18] sm:$0xff]
    %v487 = vld [vmem:[#allocation7 + $0x20] sm:$0xff]
    %v488 = vld [vmem:[#allocation7 + $0x28] sm:$0xff]
    %v489 = vld [vmem:[#allocation7 + $0x30] sm:$0xff]
    %v490 = vld [vmem:[#allocation7 + $0x38] sm:$0xff]
    %v491 = vld [vmem:[#allocation7 + $0x40] sm:$0xff]
    %v492 = vld [vmem:[#allocation7 + $0x48] sm:$0xff]
    %v493 = vld [vmem:[#allocation7 + $0x50] sm:$0xff]
    %v494 = vld [vmem:[#allocation7 + $0x58] sm:$0xff]
    %v495 = vld [vmem:[#allocation7 + $0x60] sm:$0xff]
    %v496 = vld [vmem:[#allocation7 + $0x68] sm:$0xff]
    %v497 = vld [vmem:[#allocation7 + $0x70] sm:$0xff]
    %v498 = vld [vmem:[#allocation7 + $0x78] sm:$0xff]
    %v499 = vld [vmem:[#allocation7 + $0x80] sm:$0xff]
    %v500 = vld [vmem:[#allocation7 + $0x88] sm:$0xff]
    %v501 = vld [vmem:[#allocation7 + $0x90] sm:$0xff]
    %v502 = vld [vmem:[#allocation7 + $0x98] sm:$0xff]
    %v503 = vld [vmem:[#allocation7 + $0xa0] sm:$0xff]
    %v504 = vld [vmem:[#allocation7 + $0xa8] sm:$0xff]
    %v505 = vld [vmem:[#allocation7 + $0xb0] sm:$0xff]
    %v506 = vld [vmem:[#allocation7 + $0xb8] sm:$0xff]
    %v507 = vld [vmem:[#allocation7 + $0xc0] sm:$0xff]
    %v508 = vld [vmem:[#allocation7 + $0xc8] sm:$0xff]
    %v509 = vld [vmem:[#allocation7 + $0xd0] sm:$0xff]
    %v510 = vld [vmem:[#allocation7 + $0xd8] sm:$0xff]
    %v511 = vld [vmem:[#allocation7 + $0xe0] sm:$0xff]
    %v512 = vld [vmem:[#allocation7 + $0xe8] sm:$0xff]
    %v513 = vld [vmem:[#allocation7 + $0xf0] sm:$0xff]
    %v514 = vld [vmem:[#allocation7 + $0xf8] sm:$0xff]
    %v515 = vld [vmem:[#allocation7 + $0x100] sm:$0xff]
    %v516 = vld [vmem:[#allocation7 + $0x108] sm:$0xff]
    %v517 = vld [vmem:[#allocation7 + $0x110] sm:$0xff]
    %v518 = vld [vmem:[#allocation7 + $0x118] sm:$0xff]
    %v519 = vld [vmem:[#allocation7 + $0x120] sm:$0xff]
    %v520 = vld [vmem:[#allocation7 + $0x128] sm:$0xff]
    %v521 = vld [vmem:[#allocation7 + $0x130] sm:$0xff]
    %v522 = vld [vmem:[#allocation7 + $0x138] sm:$0xff]
    %v523 = vld [vmem:[#allocation7 + $0x140] sm:$0xff]
    %v524 = vld [vmem:[#allocation7 + $0x148] sm:$0xff]
    %v525 = vld [vmem:[#allocation7 + $0x150] sm:$0xff]
    %v526 = vld [vmem:[#allocation7 + $0x158] sm:$0xff]
    %v527 = vld [vmem:[#allocation7 + $0x160] sm:$0xff]
    %v528 = vld [vmem:[#allocation7 + $0x168] sm:$0xff]
    %v529 = vld [vmem:[#allocation7 + $0x170] sm:$0xff]
    %v530 = vld [vmem:[#allocation7 + $0x178] sm:$0xff]
    %v531 = vld [vmem:[#allocation7 + $0x180] sm:$0xff]
    %v532 = vld [vmem:[#allocation7 + $0x188] sm:$0xff]
    %v533 = vld [vmem:[#allocation7 + $0x190] sm:$0xff]
    %v534 = vld [vmem:[#allocation7 + $0x198] sm:$0xff]
    %v535 = vld [vmem:[#allocation7 + $0x1a0] sm:$0xff]
    %v536 = vld [vmem:[#allocation7 + $0x1a8] sm:$0xff]
    %v537 = vld [vmem:[#allocation7 + $0x1b0] sm:$0xff]
    %v538 = vld [vmem:[#allocation7 + $0x1b8] sm:$0xff]
    %v539 = vld [vmem:[#allocation7 + $0x1c0] sm:$0xff]
    %v540 = vld [vmem:[#allocation7 + $0x1c8] sm:$0xff]
    %v541 = vld [vmem:[#allocation7 + $0x1d0] sm:$0xff]
    %v542 = vld [vmem:[#allocation7 + $0x1d8] sm:$0xff]
    %v543 = vld [vmem:[#allocation7 + $0x1e0] sm:$0xff]
    %v544 = vld [vmem:[#allocation7 + $0x1e8] sm:$0xff]
    %v545 = vld [vmem:[#allocation7 + $0x1f0] sm:$0xff]
    %v546 = vld [vmem:[#allocation7 + $0x1f8] sm:$0xff]
    %v547 = vld [vmem:[#allocation7 + $0x200] sm:$0xff]
    %v548 = vld [vmem:[#allocation7 + $0x208] sm:$0xff]
    %v549 = vld [vmem:[#allocation7 + $0x210] sm:$0xff]
    %v550 = vld [vmem:[#allocation7 + $0x218] sm:$0xff]
    %v551 = vld [vmem:[#allocation7 + $0x220] sm:$0xff]
    %v552 = vld [vmem:[#allocation7 + $0x228] sm:$0xff]
    %v553 = vld [vmem:[#allocation7 + $0x230] sm:$0xff]
    %v554 = vld [vmem:[#allocation7 + $0x238] sm:$0xff]
    %v555 = vld [vmem:[#allocation7 + $0x240] sm:$0xff]
    %v556 = vld [vmem:[#allocation7 + $0x248] sm:$0xff]
    %v557 = vld [vmem:[#allocation7 + $0x250] sm:$0xff]
    %v558 = vld [vmem:[#allocation7 + $0x258] sm:$0xff]
    %v559 = vld [vmem:[#allocation7 + $0x260] sm:$0xff]
    %v560 = vld [vmem:[#allocation7 + $0x268] sm:$0xff]
    %v561 = vld [vmem:[#allocation7 + $0x270] sm:$0xff]
    %v562 = vld [vmem:[#allocation7 + $0x278] sm:$0xff]
    %v563 = vld [vmem:[#allocation7 + $0x280] sm:$0xff]
    %v564 = vld [vmem:[#allocation7 + $0x288] sm:$0xff]
    %v565 = vld [vmem:[#allocation7 + $0x290] sm:$0xff]
    %v566 = vld [vmem:[#allocation7 + $0x298] sm:$0xff]
    %v567 = vld [vmem:[#allocation7 + $0x2a0] sm:$0xff]
    %v568 = vld [vmem:[#allocation7 + $0x2a8] sm:$0xff]
    %v569 = vld [vmem:[#allocation7 + $0x2b0] sm:$0xff]
    %v570 = vld [vmem:[#allocation7 + $0x2b8] sm:$0xff]
    %v571 = vld [vmem:[#allocation7 + $0x2c0] sm:$0xff]
    %v572 = vld [vmem:[#allocation7 + $0x2c8] sm:$0xff]
    %v573 = vld [vmem:[#allocation7 + $0x2d0] sm:$0xff]
    %v574 = vld [vmem:[#allocation7 + $0x2d8] sm:$0xff]
    %v575 = vld [vmem:[#allocation7 + $0x2e0] sm:$0xff]
    %v576 = vld [vmem:[#allocation7 + $0x2e8] sm:$0xff]
    %v577 = vld [vmem:[#allocation7 + $0x2f0] sm:$0xff]
    %v578 = vld [vmem:[#allocation7 + $0x2f8] sm:$0xff]
    %v579 = vld [vmem:[#allocation7 + $0x300] sm:$0xff]
    %v580 = vld [vmem:[#allocation7 + $0x308] sm:$0xff]
    %v581 = vld [vmem:[#allocation7 + $0x310] sm:$0xff]
    %v582 = vld [vmem:[#allocation7 + $0x318] sm:$0xff]
    %v583 = vld [vmem:[#allocation7 + $0x320] sm:$0xff]
    %v584 = vld [vmem:[#allocation7 + $0x328] sm:$0xff]
    %v585 = vld [vmem:[#allocation7 + $0x330] sm:$0xff]
    %v586 = vld [vmem:[#allocation7 + $0x338] sm:$0xff]
    %v587 = vld [vmem:[#allocation7 + $0x340] sm:$0xff]
    %v588 = vld [vmem:[#allocation7 + $0x348] sm:$0xff]
    %v589 = vld [vmem:[#allocation7 + $0x350] sm:$0xff]
    %v590 = vld [vmem:[#allocation7 + $0x358] sm:$0xff]
    %v591 = vld [vmem:[#allocation7 + $0x360] sm:$0xff]
    %v592 = vld [vmem:[#allocation7 + $0x368] sm:$0xff]
    %v593 = vld [vmem:[#allocation7 + $0x370] sm:$0xff]
    %v594 = vld [vmem:[#allocation7 + $0x378] sm:$0xff]
    %v595 = vld [vmem:[#allocation7 + $0x380] sm:$0xff]
    %v596 = vld [vmem:[#allocation7 + $0x388] sm:$0xff]
    %v597 = vld [vmem:[#allocation7 + $0x390] sm:$0xff]
    %v598 = vld [vmem:[#allocation7 + $0x398] sm:$0xff]
    %v599 = vld [vmem:[#allocation7 + $0x3a0] sm:$0xff]
    %v600 = vld [vmem:[#allocation7 + $0x3a8] sm:$0xff]
    %v601 = vld [vmem:[#allocation7 + $0x3b0] sm:$0xff]
    %v602 = vld [vmem:[#allocation7 + $0x3b8] sm:$0xff]
    %v603 = vld [vmem:[#allocation7 + $0x3c0] sm:$0xff]
    %v604 = vld [vmem:[#allocation7 + $0x3c8] sm:$0xff]
    %v605 = vld [vmem:[#allocation7 + $0x3d0] sm:$0xff]
    %v606 = vld [vmem:[#allocation7 + $0x3d8] sm:$0xff]
    %v607 = vld [vmem:[#allocation7 + $0x3e0] sm:$0xff]
    %v608 = vld [vmem:[#allocation7 + $0x3e8] sm:$0xff]
    %v609 = vld [vmem:[#allocation7 + $0x3f0] sm:$0xff]
    %v610 = vld [vmem:[#allocation7 + $0x3f8] sm:$0xff]
    %v611 = vld [vmem:[%s4] sm:$0xff]
    %v613 = vlaneseq
    %v614 = vshrl.u32 %v613, 7
    %v615 = vsub.s32 0, %v614
    %v616 = vrot.slane %v611, %v615
    %v617 = vlaneseq
    %v618 = vshrl.u32 %v617, 7
    %v619 = vsub.s32 1, %v618
    %v620 = vrot.slane %v611, %v619
    %v621 = vlaneseq
    %v622 = vshrl.u32 %v621, 7
    %v623 = vsub.s32 2, %v622
    %v624 = vrot.slane %v611, %v623
    %v625 = vlaneseq
    %v626 = vshrl.u32 %v625, 7
    %v627 = vsub.s32 3, %v626
    %v628 = vrot.slane %v611, %v627
    %v629 = vlaneseq
    %v630 = vshrl.u32 %v629, 7
    %v631 = vsub.s32 4, %v630
    %v632 = vrot.slane %v611, %v631
    %v633 = vlaneseq
    %v634 = vshrl.u32 %v633, 7
    %v635 = vsub.s32 5, %v634
    %v636 = vrot.slane %v611, %v635
    %v637 = vlaneseq
    %v638 = vshrl.u32 %v637, 7
    %v639 = vsub.s32 6, %v638
    %v640 = vrot.slane %v611, %v639
    %v641 = vlaneseq
    %v642 = vshrl.u32 %v641, 7
    %v643 = vsub.s32 7, %v642
    %v644 = vrot.slane %v611, %v643
    %653 = vmatprep.subr.mxu0 %v484
    %654 = vmatpush1.msra.mxu0 %v483
    %655 = vmatprep.subr.mxu0 %v492
    %656 = vmatpush1.msra.mxu0 %v491
    %657 = vmatprep.subr.mxu0 %v500
    %658 = vmatpush1.msra.mxu0 %v499
    %659 = vmatprep.subr.mxu0 %v508
    %660 = vmatpush1.msra.mxu0 %v507
    %661 = vmatprep.subr.mxu0 %v516
    %662 = vmatpush1.msra.mxu0 %v515
    %663 = vmatprep.subr.mxu0 %v524
    %664 = vmatpush1.msra.mxu0 %v523
    %665 = vmatprep.subr.mxu0 %v532
    %666 = vmatpush1.msra.mxu0 %v531
    %667 = vmatprep.subr.mxu0 %v540
    %668 = vmatpush1.msra.mxu0 %v539
    %669 = vmatprep.subr.mxu0 %v548
    %670 = vmatpush1.msra.mxu0 %v547
    %671 = vmatprep.subr.mxu0 %v556
    %672 = vmatpush1.msra.mxu0 %v555
    %673 = vmatprep.subr.mxu0 %v564
    %674 = vmatpush1.msra.mxu0 %v563
    %675 = vmatprep.subr.mxu0 %v572
    %676 = vmatpush1.msra.mxu0 %v571
    %677 = vmatprep.subr.mxu0 %v580
    %678 = vmatpush1.msra.mxu0 %v579
    %679 = vmatprep.subr.mxu0 %v588
    %680 = vmatpush1.msra.mxu0 %v587
    %681 = vmatprep.subr.mxu0 %v596
    %682 = vmatpush1.msra.mxu0 %v595
    %683 = vmatprep.subr.mxu0 %v604
    %684 = vmatpush1.msra.mxu0 %v603
    %685 = vmatprep.subr.mxu0 0.0
    %686 = vmatpush1.msra.mxu0 0.0
    %687 = vmatprep.subr.mxu0 0.0
    %688 = vmatpush1.msra.mxu0 0.0
    %689 = vmatprep.subr.mxu0 0.0
    %690 = vmatpush1.msra.mxu0 0.0
    %691 = vmatprep.subr.mxu0 0.0
    %692 = vmatpush1.msra.mxu0 0.0
    %693 = vmatprep.subr.mxu0 0.0
    %694 = vmatpush1.msra.mxu0 0.0
    %695 = vmatprep.subr.mxu0 0.0
    %696 = vmatpush1.msra.mxu0 0.0
    %697 = vmatprep.subr.mxu0 0.0
    %698 = vmatpush1.msra.mxu0 0.0
    %699 = vmatprep.subr.mxu0 0.0
    %700 = vmatpush1.msra.mxu0 0.0
    %701 = vmatprep.subr.mxu0 0.0
    %702 = vmatpush1.msra.mxu0 0.0
    %703 = vmatprep.subr.mxu0 0.0
    %704 = vmatpush1.msra.mxu0 0.0
    %705 = vmatprep.subr.mxu0 0.0
    %706 = vmatpush1.msra.mxu0 0.0
    %707 = vmatprep.subr.mxu0 0.0
    %708 = vmatpush1.msra.mxu0 0.0
    %709 = vmatprep.subr.mxu0 0.0
    %710 = vmatpush1.msra.mxu0 0.0
    %711 = vmatprep.subr.mxu0 0.0
    %712 = vmatpush1.msra.mxu0 0.0
    %713 = vmatprep.subr.mxu0 0.0
    %714 = vmatpush1.msra.mxu0 0.0
    %715 = vmatprep.subr.mxu0 0.0
    %716 = vmatpush1.msra.mxu0 0.0
    %717 = vmatprep.mubr.f32.mxu0 0.0
    %718 = vmatmul.mubr.f32.gmra.mrb[0].mxu0 %v480
    %v719 = vpop.f32.mrb[0].mxu0
    %v720 = vadd.f32 %v616, %v719
    %v721 = vpop.f32.mrb[0].mxu0
    %v722 = vadd.f32 %v620, %v721
    %723 = vdwg.mxu0
    %724 = vmatprep.subr.mxu0 %v486
    %725 = vmatpush1.msra.mxu0 %v485
    %726 = vmatprep.subr.mxu0 %v494
    %727 = vmatpush1.msra.mxu0 %v493
    %728 = vmatprep.subr.mxu0 %v502
    %729 = vmatpush1.msra.mxu0 %v501
    %730 = vmatprep.subr.mxu0 %v510
    %731 = vmatpush1.msra.mxu0 %v509
    %732 = vmatprep.subr.mxu0 %v518
    %733 = vmatpush1.msra.mxu0 %v517
    %734 = vmatprep.subr.mxu0 %v526
    %735 = vmatpush1.msra.mxu0 %v525
    %736 = vmatprep.subr.mxu0 %v534
    %737 = vmatpush1.msra.mxu0 %v533
    %738 = vmatprep.subr.mxu0 %v542
    %739 = vmatpush1.msra.mxu0 %v541
    %740 = vmatprep.subr.mxu0 %v550
    %741 = vmatpush1.msra.mxu0 %v549
    %742 = vmatprep.subr.mxu0 %v558
    %743 = vmatpush1.msra.mxu0 %v557
    %744 = vmatprep.subr.mxu0 %v566
    %745 = vmatpush1.msra.mxu0 %v565
    %746 = vmatprep.subr.mxu0 %v574
    %747 = vmatpush1.msra.mxu0 %v573
    %748 = vmatprep.subr.mxu0 %v582
    %749 = vmatpush1.msra.mxu0 %v581
    %750 = vmatprep.subr.mxu0 %v590
    %751 = vmatpush1.msra.mxu0 %v589
    %752 = vmatprep.subr.mxu0 %v598
    %753 = vmatpush1.msra.mxu0 %v597
    %754 = vmatprep.subr.mxu0 %v606
    %755 = vmatpush1.msra.mxu0 %v605
    %756 = vmatprep.subr.mxu0 0.0
    %757 = vmatpush1.msra.mxu0 0.0
    %758 = vmatprep.subr.mxu0 0.0
    %759 = vmatpush1.msra.mxu0 0.0
    %760 = vmatprep.subr.mxu0 0.0
    %761 = vmatpush1.msra.mxu0 0.0
    %762 = vmatprep.subr.mxu0 0.0
    %763 = vmatpush1.msra.mxu0 0.0
    %764 = vmatprep.subr.mxu0 0.0
    %765 = vmatpush1.msra.mxu0 0.0
    %766 = vmatprep.subr.mxu0 0.0
    %767 = vmatpush1.msra.mxu0 0.0
    %768 = vmatprep.subr.mxu0 0.0
    %769 = vmatpush1.msra.mxu0 0.0
    %770 = vmatprep.subr.mxu0 0.0
    %771 = vmatpush1.msra.mxu0 0.0
    %772 = vmatprep.subr.mxu0 0.0
    %773 = vmatpush1.msra.mxu0 0.0
    %774 = vmatprep.subr.mxu0 0.0
    %775 = vmatpush1.msra.mxu0 0.0
    %776 = vmatprep.subr.mxu0 0.0
    %777 = vmatpush1.msra.mxu0 0.0
    %778 = vmatprep.subr.mxu0 0.0
    %779 = vmatpush1.msra.mxu0 0.0
    %780 = vmatprep.subr.mxu0 0.0
    %781 = vmatpush1.msra.mxu0 0.0
    %782 = vmatprep.subr.mxu0 0.0
    %783 = vmatpush1.msra.mxu0 0.0
    %784 = vmatprep.subr.mxu0 0.0
    %785 = vmatpush1.msra.mxu0 0.0
    %786 = vmatprep.subr.mxu0 0.0
    %787 = vmatpush1.msra.mxu0 0.0
    %788 = vmatprep.mubr.f32.mxu0 0.0
    %789 = vmatmul.mubr.f32.gmra.mrb[0].mxu0 %v480
    %v790 = vpop.f32.mrb[0].mxu0
    %v791 = vadd.f32 %v624, %v790
    %v792 = vpop.f32.mrb[0].mxu0
    %v793 = vadd.f32 %v628, %v792
    %794 = vdwg.mxu0
    %795 = vmatprep.subr.mxu0 %v488
    %796 = vmatpush1.msra.mxu0 %v487
    %797 = vmatprep.subr.mxu0 %v496
    %798 = vmatpush1.msra.mxu0 %v495
    %799 = vmatprep.subr.mxu0 %v504
    %800 = vmatpush1.msra.mxu0 %v503
    %801 = vmatprep.subr.mxu0 %v512
    %802 = vmatpush1.msra.mxu0 %v511
    %803 = vmatprep.subr.mxu0 %v520
    %804 = vmatpush1.msra.mxu0 %v519
    %805 = vmatprep.subr.mxu0 %v528
    %806 = vmatpush1.msra.mxu0 %v527
    %807 = vmatprep.subr.mxu0 %v536
    %808 = vmatpush1.msra.mxu0 %v535
    %809 = vmatprep.subr.mxu0 %v544
    %810 = vmatpush1.msra.mxu0 %v543
    %811 = vmatprep.subr.mxu0 %v552
    %812 = vmatpush1.msra.mxu0 %v551
    %813 = vmatprep.subr.mxu0 %v560
    %814 = vmatpush1.msra.mxu0 %v559
    %815 = vmatprep.subr.mxu0 %v568
    %816 = vmatpush1.msra.mxu0 %v567
    %817 = vmatprep.subr.mxu0 %v576
    %818 = vmatpush1.msra.mxu0 %v575
    %819 = vmatprep.subr.mxu0 %v584
    %820 = vmatpush1.msra.mxu0 %v583
    %821 = vmatprep.subr.mxu0 %v592
    %822 = vmatpush1.msra.mxu0 %v591
    %823 = vmatprep.subr.mxu0 %v600
    %824 = vmatpush1.msra.mxu0 %v599
    %825 = vmatprep.subr.mxu0 %v608
    %826 = vmatpush1.msra.mxu0 %v607
    %827 = vmatprep.subr.mxu0 0.0
    %828 = vmatpush1.msra.mxu0 0.0
    %829 = vmatprep.subr.mxu0 0.0
    %830 = vmatpush1.msra.mxu0 0.0
    %831 = vmatprep.subr.mxu0 0.0
    %832 = vmatpush1.msra.mxu0 0.0
    %833 = vmatprep.subr.mxu0 0.0
    %834 = vmatpush1.msra.mxu0 0.0
    %835 = vmatprep.subr.mxu0 0.0
    %836 = vmatpush1.msra.mxu0 0.0
    %837 = vmatprep.subr.mxu0 0.0
    %838 = vmatpush1.msra.mxu0 0.0
    %839 = vmatprep.subr.mxu0 0.0
    %840 = vmatpush1.msra.mxu0 0.0
    %841 = vmatprep.subr.mxu0 0.0
    %842 = vmatpush1.msra.mxu0 0.0
    %843 = vmatprep.subr.mxu0 0.0
    %844 = vmatpush1.msra.mxu0 0.0
    %845 = vmatprep.subr.mxu0 0.0
    %846 = vmatpush1.msra.mxu0 0.0
    %847 = vmatprep.subr.mxu0 0.0
    %848 = vmatpush1.msra.mxu0 0.0
    %849 = vmatprep.subr.mxu0 0.0
    %850 = vmatpush1.msra.mxu0 0.0
    %851 = vmatprep.subr.mxu0 0.0
    %852 = vmatpush1.msra.mxu0 0.0
    %853 = vmatprep.subr.mxu0 0.0
    %854 = vmatpush1.msra.mxu0 0.0
    %855 = vmatprep.subr.mxu0 0.0
    %856 = vmatpush1.msra.mxu0 0.0
    %857 = vmatprep.subr.mxu0 0.0
    %858 = vmatpush1.msra.mxu0 0.0
    %859 = vmatprep.mubr.f32.mxu0 0.0
    %860 = vmatmul.mubr.f32.gmra.mrb[0].mxu0 %v480
    %v861 = vpop.f32.mrb[0].mxu0
    %v862 = vadd.f32 %v632, %v861
    %v863 = vpop.f32.mrb[0].mxu0
    %v864 = vadd.f32 %v636, %v863
    %865 = vdwg.mxu0
    %866 = vmatprep.subr.mxu0 %v490
    %867 = vmatpush1.msra.mxu0 %v489
    %868 = vmatprep.subr.mxu0 %v498
    %869 = vmatpush1.msra.mxu0 %v497
    %870 = vmatprep.subr.mxu0 %v506
    %871 = vmatpush1.msra.mxu0 %v505
    %872 = vmatprep.subr.mxu0 %v514
    %873 = vmatpush1.msra.mxu0 %v513
    %874 = vmatprep.subr.mxu0 %v522
    %875 = vmatpush1.msra.mxu0 %v521
    %876 = vmatprep.subr.mxu0 %v530
    %877 = vmatpush1.msra.mxu0 %v529
    %878 = vmatprep.subr.mxu0 %v538
    %879 = vmatpush1.msra.mxu0 %v537
    %880 = vmatprep.subr.mxu0 %v546
    %881 = vmatpush1.msra.mxu0 %v545
    %882 = vmatprep.subr.mxu0 %v554
    %883 = vmatpush1.msra.mxu0 %v553
    %884 = vmatprep.subr.mxu0 %v562
    %885 = vmatpush1.msra.mxu0 %v561
    %886 = vmatprep.subr.mxu0 %v570
    %887 = vmatpush1.msra.mxu0 %v569
    %888 = vmatprep.subr.mxu0 %v578
    %889 = vmatpush1.msra.mxu0 %v577
    %890 = vmatprep.subr.mxu0 %v586
    %891 = vmatpush1.msra.mxu0 %v585
    %892 = vmatprep.subr.mxu0 %v594
    %893 = vmatpush1.msra.mxu0 %v593
    %894 = vmatprep.subr.mxu0 %v602
    %895 = vmatpush1.msra.mxu0 %v601
    %896 = vmatprep.subr.mxu0 %v610
    %897 = vmatpush1.msra.mxu0 %v609
    %898 = vmatprep.subr.mxu0 0.0
    %899 = vmatpush1.msra.mxu0 0.0
    %900 = vmatprep.subr.mxu0 0.0
    %901 = vmatpush1.msra.mxu0 0.0
    %902 = vmatprep.subr.mxu0 0.0
    %903 = vmatpush1.msra.mxu0 0.0
    %904 = vmatprep.subr.mxu0 0.0
    %905 = vmatpush1.msra.mxu0 0.0
    %906 = vmatprep.subr.mxu0 0.0
    %907 = vmatpush1.msra.mxu0 0.0
    %908 = vmatprep.subr.mxu0 0.0
    %909 = vmatpush1.msra.mxu0 0.0
    %910 = vmatprep.subr.mxu0 0.0
    %911 = vmatpush1.msra.mxu0 0.0
    %912 = vmatprep.subr.mxu0 0.0
    %913 = vmatpush1.msra.mxu0 0.0
    %914 = vmatprep.subr.mxu0 0.0
    %915 = vmatpush1.msra.mxu0 0.0
    %916 = vmatprep.subr.mxu0 0.0
    %917 = vmatpush1.msra.mxu0 0.0
    %918 = vmatprep.subr.mxu0 0.0
    %919 = vmatpush1.msra.mxu0 0.0
    %920 = vmatprep.subr.mxu0 0.0
    %921 = vmatpush1.msra.mxu0 0.0
    %922 = vmatprep.subr.mxu0 0.0
    %923 = vmatpush1.msra.mxu0 0.0
    %924 = vmatprep.subr.mxu0 0.0
    %925 = vmatpush1.msra.mxu0 0.0
    %926 = vmatprep.subr.mxu0 0.0
    %927 = vmatpush1.msra.mxu0 0.0
    %928 = vmatprep.subr.mxu0 0.0
    %929 = vmatpush1.msra.mxu0 0.0
    %930 = vmatprep.mubr.f32.mxu0 0.0
    %931 = vmatmul.mubr.f32.gmra.mrb[0].mxu0 %v480
    %v932 = vpop.f32.mrb[0].mxu0
    %v933 = vadd.f32 %v640, %v932
    %v934 = vpop.f32.mrb[0].mxu0
    %v935 = vadd.f32 %v644, %v934
    %936 = vdwg.mxu0
    %937 = vst [vmem:[#allocation8] sm:$0xff] %v720
    %938 = vst [vmem:[#allocation8 + $0x8] sm:$0xff] %v722
    %939 = vst [vmem:[#allocation8 + $0x10] sm:$0xff] %v791
    %940 = vst [vmem:[#allocation8 + $0x18] sm:$0xff] %v793
    %941 = vst [vmem:[#allocation8 + $0x20] sm:$0xff] %v862
    %942 = vst [vmem:[#allocation8 + $0x28] sm:$0xff] %v864
    %943 = vst [vmem:[#allocation8 + $0x30] sm:$0xff] %v933
    %944 = vst [vmem:[#allocation8 + $0x38] sm:$0xff] %v935
    // Predicated region
    $region34: #{tpu_custom_call.1} parent=1 // pred_check
      _
    $region35: #{tpu_custom_call.1} parent=1 // pred_check_branch
      %946 = sbr.rel (0) target = $region37
    $region36: #{tpu_custom_call.1} parent=1 // pred_region
      %s948 = ssub.s32 1024, 1024
      %949 = vsyncadd [#allocation4], %s948
      %s951 = sshll.u32 [#allocation8], 4
      %s952 = int_to_ptr.vmem [resolvable:$true] %s951
      %954 = dma.vmem_to_hbm [thread:$0]  %s952, 1024, %s5, [#allocation4]
    $region37: #{tpu_custom_call.1} parent=1 // pred_fallthru
      _
    // Predicated region
    $region38: #{tpu_custom_call.1} parent=1 // pred_check
      _
    $region39: #{tpu_custom_call.1} parent=1 // pred_check_branch
      %956 = sbr.rel (0) target = $region41
    $region40: #{tpu_custom_call.1} parent=1 // pred_region
      %957 = dma.done [#allocation4], 1024
    $region41: #{tpu_custom_call.1} parent=1 // pred_fallthru
      _
    %958 = vsyncpa [#allocation3], 1
    %959 = vsyncpa [#allocation6], 1
    %960 = vsyncpa [#allocation4], 1

</llo_original>
